<compile_context>
chip_gen: v7x
topology: tpu7x:2x2x1
jax: 0.10.0
libtpu: 0.0.40
codegen_flags: <defaults>
</compile_context>

<pallas_src>
import functools

import jax
import jax.numpy as jnp
from jax.experimental import pallas as pl
from jax.experimental.pallas import tpu as pltpu

EPS = 1e-5


def _round_up(x, m):
    return (x + m - 1) // m * m


def _bitlinear158_matmul_kernel(x_ref, wq_ref, b_ref, o_ref, acc_ref):
    """Computes one (tm, tn) output tile; K is the innermost reduction axis."""
    k = pl.program_id(2)

    @pl.when(k == 0)
    def _():
        acc_ref[...] = jnp.zeros_like(acc_ref)

    # bf16 x bf16 -> f32 accumulate on the MXU (no transpose: Wq is (K, N)).
    acc_ref[...] += jnp.dot(
        x_ref[...], wq_ref[...], preferred_element_type=jnp.float32
    )

    @pl.when(k == pl.num_programs(2) - 1)
    def _():
        o_ref[...] = (acc_ref[...] + b_ref[...]).astype(o_ref.dtype)


def quantize_weights(weight):
    """gamma = mean(|W|); Wq = clip(round(W / (gamma + eps)), -1, 1)  (f32)."""
    w32 = weight.astype(jnp.float32)
    gamma = jnp.mean(jnp.abs(w32))
    return jnp.clip(jnp.round(w32 / (gamma + EPS)), -1.0, 1.0)


@functools.partial(jax.jit, static_argnames=("tile_m", "tile_n", "tile_k"))
def bitlinear158(x, weight, bias=None, *, tile_m=256, tile_n=256, tile_k=512):
    """x: (..., K), weight: (N, K), bias: (N,) or None -> (..., N)."""
    *lead, K = x.shape
    N = weight.shape[0]
    M = 1
    for d in lead:
        M *= d

    # --- one-shot weight quantization (hoisted out of the matmul loop) ----
    # Done in f32 for exact parity with the PyTorch module; ternary result is
    # exactly representable in bf16.  Stored transposed (K, N).
    # TODO(synk): on v5e/v6e an int8 Wq (full-rate int MXU, 4x less weight
    # DMA/VMEM) is also valid; bf16 is used here since v7x has no int MXU path.
    wq_t = quantize_weights(weight).T.astype(jnp.bfloat16)          # (K, N)

    x2d = x.reshape(M, K).astype(jnp.bfloat16)
    if bias is None:
        b2d = jnp.zeros((1, N), jnp.float32)
    else:
        b2d = bias.reshape(1, N).astype(jnp.float32)

    # --- tile sizes & zero padding to tile multiples -----------------------
    tm = min(tile_m, _round_up(M, 8))
    tn = min(tile_n, _round_up(N, 128))
    tk = min(tile_k, _round_up(K, 128))
    Mp, Np, Kp = _round_up(M, tm), _round_up(N, tn), _round_up(K, tk)

    if (Mp, Kp) != (M, K):
        x2d = jnp.pad(x2d, ((0, Mp - M), (0, Kp - K)))
    if (Kp, Np) != (K, N):
        wq_t = jnp.pad(wq_t, ((0, Kp - K), (0, Np - N)))
    if Np != N:
        b2d = jnp.pad(b2d, ((0, 0), (0, Np - N)))

    grid = (Mp // tm, Np // tn, Kp // tk)

    out = pl.pallas_call(
        _bitlinear158_matmul_kernel,
        out_shape=jax.ShapeDtypeStruct((Mp, Np), jnp.float32),
        grid_spec=pltpu.PrefetchScalarGridSpec(
            num_scalar_prefetch=0,
            grid=grid,
            in_specs=[
                pl.BlockSpec((tm, tk), lambda i, j, k: (i, k)),   # x tile
                pl.BlockSpec((tk, tn), lambda i, j, k: (k, j)),   # Wq.T tile
                pl.BlockSpec((1, tn), lambda i, j, k: (0, j)),    # bias row
            ],
            out_specs=pl.BlockSpec((tm, tn), lambda i, j, k: (i, j)),
            scratch_shapes=[pltpu.VMEM((tm, tn), jnp.float32)],
        ),
        compiler_params=pltpu.CompilerParams(
            dimension_semantics=("parallel", "parallel", "arbitrary"),
        ),
    )(x2d, wq_t, b2d)

    out = out[:M, :N]
    return out.reshape(*lead, N)


def bitlinear158_reference(x, weight, bias):
    """Pure-JAX reference with the exact module semantics (f32)."""
    gamma = jnp.mean(jnp.abs(weight))
    wq = jnp.clip(jnp.round(weight / (gamma + EPS)), -1.0, 1.0)
    y = jnp.einsum(
        "...k,nk->...n", x, wq,
        preferred_element_type=jnp.float32,
        precision=jax.lax.Precision.HIGHEST,
    )
    return y + bias


if __name__ == "__main__":
    # Small shapes: batch=2, seq=8, in_features=128, out_features=256
    B, S, K, N = 2, 8, 128, 256
    key = jax.random.PRNGKey(0)
    kx, kw, kb = jax.random.split(key, 3)

    x = jax.random.normal(kx, (B, S, K), dtype=jnp.float32)
    # Deterministic parameter init (module leaves params uninitialized).
    weight = jax.random.normal(kw, (N, K), dtype=jnp.float32) * 0.02
    bias = jax.random.normal(kb, (N,), dtype=jnp.float32) * 0.01

    y = bitlinear158(x, weight, bias)
    y = jax.block_until_ready(y)
    assert y.shape == (B, S, N)

    # Matched-precision reference (bf16 activations, f32 accumulate): tight tol.
    x_bf = x.astype(jnp.bfloat16).astype(jnp.float32)
    y_ref_bf = bitlinear158_reference(x_bf, weight, bias)
    assert jnp.allclose(y, y_ref_bf, atol=1e-2, rtol=1e-2), "mismatch (bf16 ref)"

    # Exact module semantics in f32: loose tol (delta = bf16 activation rounding).
    y_ref = bitlinear158_reference(x, weight, bias)
    assert jnp.allclose(y, y_ref, atol=0.2, rtol=0.05), "mismatch (f32 ref)"

    print("KERNEL_OK")
</pallas_src>

<mosaic_0001>
module attributes {stable_mosaic.version = 11 : i64} {
  func.func @_bitlinear158_matmul_kernel(%arg0: i32, %arg1: i32, %arg2: i32, %arg3: memref<16x128xbf16, #tpu.memory_space<vmem>>, %arg4: memref<128x256xbf16, #tpu.memory_space<vmem>>, %arg5: memref<1x256xf32, #tpu.memory_space<vmem>>, %arg6: memref<16x256xf32, #tpu.memory_space<vmem>>, %arg7: memref<16x256xf32, #tpu.memory_space<vmem>>) attributes {dimension_semantics = [#tpu.dimension_semantics<parallel>, #tpu.dimension_semantics<parallel>, #tpu.dimension_semantics<arbitrary>], iteration_bounds = array<i64: 1, 1, 1>, scalar_prefetch = 0 : i64, scratch_operands = 1 : i64, tpu.core_type = #tpu.core_type<tc>, window_params = [{transform_indices = @transform_0, window_bounds = array<i64: 16, 128>}, {transform_indices = @transform_1, window_bounds = array<i64: 128, 256>}, {transform_indices = @transform_2, window_bounds = array<i64: 1, 256>}, {transform_indices = @transform_3, window_bounds = array<i64: 16, 256>}]} {
    %c0_i32 = arith.constant 0 : i32
    %0 = arith.cmpi eq, %arg2, %c0_i32 : i32
    %1 = arith.extui %0 : i1 to i32
    %c0_i32_0 = arith.constant 0 : i32
    %2 = arith.cmpi ne, %1, %c0_i32_0 : i32
    scf.if %2 {
      %cst_10 = arith.constant 0.000000e+00 : f32
      %12 = vector.broadcast %cst_10 : f32 to vector<16x256xf32>
      %c0_11 = arith.constant 0 : index
      %c0_12 = arith.constant 0 : index
      %13 = vector.load %arg7[%c0_11, %c0_12] : memref<16x256xf32, #tpu.memory_space<vmem>>, vector<16x256xf32>
      tpu.vector_store %arg7[%c0_11, %c0_12], %12 {strides = array<i32>} : memref<16x256xf32, #tpu.memory_space<vmem>>, vector<16x256xf32>,
    } else {
    }
    %c0 = arith.constant 0 : index
    %c0_1 = arith.constant 0 : index
    %3 = vector.load %arg7[%c0, %c0_1] : memref<16x256xf32, #tpu.memory_space<vmem>>, vector<16x256xf32>
    %c0_2 = arith.constant 0 : index
    %c0_3 = arith.constant 0 : index
    %4 = vector.load %arg3[%c0_2, %c0_3] : memref<16x128xbf16, #tpu.memory_space<vmem>>, vector<16x128xbf16>
    %c0_4 = arith.constant 0 : index
    %c0_5 = arith.constant 0 : index
    %5 = vector.load %arg4[%c0_4, %c0_5] : memref<128x256xbf16, #tpu.memory_space<vmem>>, vector<128x256xbf16>
    %cst = arith.constant dense<0.000000e+00> : vector<16x256xf32>
    %6 = tpu.matmul %4, %5, %cst {dimension_numbers = #tpu.dot_dimension_numbers<[1], [0], [0], [1], [0, 0, 1, 1], [], []>} : vector<16x128xbf16>, vector<128x256xbf16>, vector<16x256xf32> -> vector<16x256xf32>
    %7 = arith.addf %3, %6 : vector<16x256xf32>
    %c0_6 = arith.constant 0 : index
    %c0_7 = arith.constant 0 : index
    %8 = vector.load %arg7[%c0_6, %c0_7] : memref<16x256xf32, #tpu.memory_space<vmem>>, vector<16x256xf32>
    tpu.vector_store %arg7[%c0_6, %c0_7], %7 {strides = array<i32>} : memref<16x256xf32, #tpu.memory_space<vmem>>, vector<16x256xf32>,
    %c0_i32_8 = arith.constant 0 : i32
    %9 = arith.cmpi eq, %arg2, %c0_i32_8 : i32
    %10 = arith.extui %9 : i1 to i32
    %c0_i32_9 = arith.constant 0 : i32
    %11 = arith.cmpi ne, %10, %c0_i32_9 : i32
    scf.if %11 {
      %c0_10 = arith.constant 0 : index
      %c0_11 = arith.constant 0 : index
      %12 = vector.load %arg7[%c0_10, %c0_11] : memref<16x256xf32, #tpu.memory_space<vmem>>, vector<16x256xf32>
      %c0_12 = arith.constant 0 : index
      %c0_13 = arith.constant 0 : index
      %13 = vector.load %arg5[%c0_12, %c0_13] : memref<1x256xf32, #tpu.memory_space<vmem>>, vector<1x256xf32>
      %14 = vector.broadcast %13 : vector<1x256xf32> to vector<16x256xf32>
      %15 = arith.addf %12, %14 : vector<16x256xf32>
      %c0_14 = arith.constant 0 : index
      %c0_15 = arith.constant 0 : index
      %16 = vector.load %arg6[%c0_14, %c0_15] : memref<16x256xf32, #tpu.memory_space<vmem>>, vector<16x256xf32>
      tpu.vector_store %arg6[%c0_14, %c0_15], %15 {strides = array<i32>} : memref<16x256xf32, #tpu.memory_space<vmem>>, vector<16x256xf32>,
    } else {
    }
    return
  }
  func.func @transform_0(%arg0: i32, %arg1: i32, %arg2: i32) -> (i32, i32) {
    %c0_i32 = arith.constant 0 : i32
    return %arg0, %arg2 : i32, i32
  }
  func.func @transform_1(%arg0: i32, %arg1: i32, %arg2: i32) -> (i32, i32) {
    %c0_i32 = arith.constant 0 : i32
    return %arg2, %arg1 : i32, i32
  }
  func.func @transform_2(%arg0: i32, %arg1: i32, %arg2: i32) -> (i32, i32) {
    %c0_i32 = arith.constant 0 : i32
    %c0_i32_0 = arith.constant 0 : i32
    return %c0_i32, %arg1 : i32, i32
  }
  func.func @transform_3(%arg0: i32, %arg1: i32, %arg2: i32) -> (i32, i32) {
    %c0_i32 = arith.constant 0 : i32
    return %arg0, %arg1 : i32, i32
  }
}

</mosaic_0001>

<llo_original>
// kernel: bitlinear158.1
$region0: #{bitlinear158.1}
  #allocation0 [shape = 'u32[]', space=smem, size = 0x4, offset = 0x4, fixed_abs, tag = 'smem constant byte address 0x4 - core index']
  #allocation1 [shape = 'u32[144,128]{1,0:T(1,128)}', space=vmem, size = 0x12000, scoped, tag = 'internal scratch']
  #allocation2 [shape = 'f32[16,256]{1,0:T(8,128)}', space=vmem, size = 0x4000, scoped, tag = 'scratch operand']
  %s0 = inlined_call_operand.vmem [shape: bf16[16,128], index: 0, kind: input, shape index: {}]
  %s1 = inlined_call_operand.vmem [shape: bf16[128,256], index: 1, kind: input, shape index: {}]
  %s2 = inlined_call_operand.vmem [shape: f32[1,256], index: 2, kind: input, shape index: {}]
  %s3 = inlined_call_operand.hbm [shape: f32[16,256], index: 3, kind: output, shape index: {}]
  %s4 = sld [smem:[#allocation0]]
  $region30: #{bitlinear158.1} parent=0
    _
  %s6 = ssub.s32 1, %s4
  %s7 = scalar_select 0, %s6, %s4
  $region1: #{bitlinear158.1} parent=0
    #allocation3 [shape = 'u8[16384]{0}', space=vmem, size = 0x4000, scoped, tag = 'output window, operand 0, single buffered']
    #allocation4 [shape = 's32[1]{0}', space=sflag, size = 0x4, scoped, tag = 'scoped memory for bitlinear158.1']
    %8 = vsyncpa [#allocation4], 0
    // Predicated region
    $region2: #{bitlinear158.1} parent=1 // pred_check
      _
    $region3: #{bitlinear158.1} parent=1 // pred_check_branch
      %10 = sbr.rel (0) target = $region5
    $region4: #{bitlinear158.1} parent=1 // pred_region
      _
    $region5: #{bitlinear158.1} parent=1 // pred_fallthru
      _
    // Predicated region
    $region6: #{bitlinear158.1} parent=1 // pred_check
      _
    $region7: #{bitlinear158.1} parent=1 // pred_check_branch
      %12 = sbr.rel (0) target = $region9
    $region8: #{bitlinear158.1} parent=1 // pred_region
      _
    $region9: #{bitlinear158.1} parent=1 // pred_fallthru
      _
    // Predicated region
    $region10: #{bitlinear158.1} parent=1 // pred_check
      _
    $region11: #{bitlinear158.1} parent=1 // pred_check_branch
      %14 = sbr.rel (0) target = $region13
    $region12: #{bitlinear158.1} parent=1 // pred_region
      _
    $region13: #{bitlinear158.1} parent=1 // pred_fallthru
      _
    %p16 = scmp.eq.s32.totalorder 0, 0
    // Predicated region
    $region14: #{bitlinear158.1} parent=1 // pred_check
      %p17 = pneg %p16
    $region15: #{bitlinear158.1} parent=1 // pred_check_branch
      %19 = sbr.rel (%p17) target = $region17
    $region16: #{bitlinear158.1} parent=1 // pred_region
      %20 = vst [vmem:[#allocation2] sm:$0xff] 0.0
      %21 = vst [vmem:[#allocation2 + $0x8] sm:$0xff] 0.0
      %22 = vst [vmem:[#allocation2 + $0x10] sm:$0xff] 0.0
      %23 = vst [vmem:[#allocation2 + $0x18] sm:$0xff] 0.0
    $region17: #{bitlinear158.1} parent=1 // pred_fallthru
      _
    %v24 = vld [vmem:[#allocation2] sm:$0xff]
    %v25 = vld [vmem:[#allocation2 + $0x8] sm:$0xff]
    %v26 = vld [vmem:[#allocation2 + $0x10] sm:$0xff]
    %v27 = vld [vmem:[#allocation2 + $0x18] sm:$0xff]
    %v28 = vld [vmem:[%s0] sm:$0xf]
    %v29 = vld [vmem:[%s0 + $0x4] sm:$0xf]
    %v30 = vld [vmem:[%s1] sm:$0xff]
    %v31 = vld [vmem:[%s1 + $0x8] sm:$0xff]
    %v32 = vld [vmem:[%s1 + $0x10] sm:$0xff]
    %v33 = vld [vmem:[%s1 + $0x18] sm:$0xff]
    %v34 = vld [vmem:[%s1 + $0x20] sm:$0xff]
    %v35 = vld [vmem:[%s1 + $0x28] sm:$0xff]
    %v36 = vld [vmem:[%s1 + $0x30] sm:$0xff]
    %v37 = vld [vmem:[%s1 + $0x38] sm:$0xff]
    %v38 = vld [vmem:[%s1 + $0x40] sm:$0xff]
    %v39 = vld [vmem:[%s1 + $0x48] sm:$0xff]
    %v40 = vld [vmem:[%s1 + $0x50] sm:$0xff]
    %v41 = vld [vmem:[%s1 + $0x58] sm:$0xff]
    %v42 = vld [vmem:[%s1 + $0x60] sm:$0xff]
    %v43 = vld [vmem:[%s1 + $0x68] sm:$0xff]
    %v44 = vld [vmem:[%s1 + $0x70] sm:$0xff]
    %v45 = vld [vmem:[%s1 + $0x78] sm:$0xff]
    %v48 = vunpack.c.l.b16 %v28
    %v49 = vunpack.c.l.b16 %v29
    %v50 = vpack.c.b16 %v49, %v48
    %v68 = vunpack.c.l.b16 %v30
    %v69 = vunpack.c.h.b16 %v30
    %v70 = vunpack.c.l.b16 %v31
    %v71 = vunpack.c.h.b16 %v31
    %v72 = vunpack.c.l.b16 %v32
    %v73 = vunpack.c.h.b16 %v32
    %v74 = vunpack.c.l.b16 %v33
    %v75 = vunpack.c.h.b16 %v33
    %v76 = vunpack.c.l.b16 %v34
    %v77 = vunpack.c.h.b16 %v34
    %v78 = vunpack.c.l.b16 %v35
    %v79 = vunpack.c.h.b16 %v35
    %v80 = vunpack.c.l.b16 %v36
    %v81 = vunpack.c.h.b16 %v36
    %v82 = vunpack.c.l.b16 %v37
    %v83 = vunpack.c.h.b16 %v37
    %v84 = vunpack.c.l.b16 %v38
    %v85 = vunpack.c.h.b16 %v38
    %v86 = vunpack.c.l.b16 %v39
    %v87 = vunpack.c.h.b16 %v39
    %v88 = vunpack.c.l.b16 %v40
    %v89 = vunpack.c.h.b16 %v40
    %v90 = vunpack.c.l.b16 %v41
    %v91 = vunpack.c.h.b16 %v41
    %v92 = vunpack.c.l.b16 %v42
    %v93 = vunpack.c.h.b16 %v42
    %v94 = vunpack.c.l.b16 %v43
    %v95 = vunpack.c.h.b16 %v43
    %v96 = vunpack.c.l.b16 %v44
    %v97 = vunpack.c.h.b16 %v44
    %v98 = vunpack.c.l.b16 %v45
    %v99 = vunpack.c.h.b16 %v45
    %v100 = vpack.c.b16 %v70, %v68
    %v101 = vpack.c.b16 %v71, %v69
    %v102 = vpack.c.b16 %v74, %v72
    %v103 = vpack.c.b16 %v75, %v73
    %v104 = vpack.c.b16 %v78, %v76
    %v105 = vpack.c.b16 %v79, %v77
    %v106 = vpack.c.b16 %v82, %v80
    %v107 = vpack.c.b16 %v83, %v81
    %v108 = vpack.c.b16 %v86, %v84
    %v109 = vpack.c.b16 %v87, %v85
    %v110 = vpack.c.b16 %v90, %v88
    %v111 = vpack.c.b16 %v91, %v89
    %v112 = vpack.c.b16 %v94, %v92
    %v113 = vpack.c.b16 %v95, %v93
    %v114 = vpack.c.b16 %v98, %v96
    %v115 = vpack.c.b16 %v99, %v97
    %132 = vmatprep.subr.bf16.mxu0 %v101
    %133 = vmatpush1.bf16.msra.mxu0 %v100
    %134 = vmatprep.subr.bf16.mxu0 %v103
    %135 = vmatpush1.bf16.msra.mxu0 %v102
    %136 = vmatprep.subr.bf16.mxu0 %v105
    %137 = vmatpush1.bf16.msra.mxu0 %v104
    %138 = vmatprep.subr.bf16.mxu0 %v107
    %139 = vmatpush1.bf16.msra.mxu0 %v106
    %140 = vmatprep.subr.bf16.mxu0 %v109
    %141 = vmatpush1.bf16.msra.mxu0 %v108
    %142 = vmatprep.subr.bf16.mxu0 %v111
    %143 = vmatpush1.bf16.msra.mxu0 %v110
    %144 = vmatprep.subr.bf16.mxu0 %v113
    %145 = vmatpush1.bf16.msra.mxu0 %v112
    %146 = vmatprep.subr.bf16.mxu0 %v115
    %147 = vmatpush1.bf16.msra.mxu0 %v114
    %148 = vmatprep.subr.bf16.mxu0 0
    %149 = vmatpush1.bf16.msra.mxu0 0
    %150 = vmatprep.subr.bf16.mxu0 0
    %151 = vmatpush1.bf16.msra.mxu0 0
    %152 = vmatprep.subr.bf16.mxu0 0
    %153 = vmatpush1.bf16.msra.mxu0 0
    %154 = vmatprep.subr.bf16.mxu0 0
    %155 = vmatpush1.bf16.msra.mxu0 0
    %156 = vmatprep.subr.bf16.mxu0 0
    %157 = vmatpush1.bf16.msra.mxu0 0
    %158 = vmatprep.subr.bf16.mxu0 0
    %159 = vmatpush1.bf16.msra.mxu0 0
    %160 = vmatprep.subr.bf16.mxu0 0
    %161 = vmatpush1.bf16.msra.mxu0 0
    %162 = vmatprep.subr.bf16.mxu0 0
    %163 = vmatpush1.bf16.msra.mxu0 0
    %164 = vmatprep.mubr.bf16.mxu0 0
    %165 = vmatmul.mubr.bf16.gmra.mrb[0].mxu0 %v50
    %v166 = vpop.f32.mrb[0].mxu0
    %v167 = vadd.f32 0.0, %v166
    %v168 = vpop.f32.mrb[0].mxu0
    %v169 = vadd.f32 0.0, %v168
    %v170 = vpop.f32.mrb[0].mxu0
    %v171 = vadd.f32 0.0, %v170
    %v172 = vpop.f32.mrb[0].mxu0
    %v173 = vadd.f32 0.0, %v172
    %174 = vdwg.mxu0
    %v175 = vadd.f32 %v24, %v167
    %v176 = vadd.f32 %v25, %v169
    %v177 = vadd.f32 %v26, %v171
    %v178 = vadd.f32 %v27, %v173
    %179 = vst [vmem:[#allocation2] sm:$0xff] %v175
    %180 = vst [vmem:[#allocation2 + $0x8] sm:$0xff] %v176
    %181 = vst [vmem:[#allocation2 + $0x10] sm:$0xff] %v177
    %182 = vst [vmem:[#allocation2 + $0x18] sm:$0xff] %v178
    // Predicated region
    $region18: #{bitlinear158.1} parent=1 // pred_check
      %p183 = pneg %p16
    $region19: #{bitlinear158.1} parent=1 // pred_check_branch
      %185 = sbr.rel (%p183) target = $region21
    $region20: #{bitlinear158.1} parent=1 // pred_region
      %v186 = vld [vmem:[#allocation2] sm:$0xff]
      %v187 = vld [vmem:[#allocation2 + $0x8] sm:$0xff]
      %v188 = vld [vmem:[#allocation2 + $0x10] sm:$0xff]
      %v189 = vld [vmem:[#allocation2 + $0x18] sm:$0xff]
      %v190 = vld [vmem:[%s2] sm:$0x3]
      %v192 = vlaneseq
      %v193 = vshrl.u32 %v192, 7
      %v194 = vsub.s32 0, %v193
      %v195 = vrot.slane %v190, %v194
      %v196 = vlaneseq
      %v197 = vshrl.u32 %v196, 7
      %v198 = vsub.s32 1, %v197
      %v199 = vrot.slane %v190, %v198
      %v202 = vadd.f32 %v186, %v195
      %v203 = vadd.f32 %v187, %v199
      %v204 = vadd.f32 %v188, %v195
      %v205 = vadd.f32 %v189, %v199
      %206 = vst [vmem:[#allocation3] sm:$0xff] %v202
      %207 = vst [vmem:[#allocation3 + $0x8] sm:$0xff] %v203
      %208 = vst [vmem:[#allocation3 + $0x10] sm:$0xff] %v204
      %209 = vst [vmem:[#allocation3 + $0x18] sm:$0xff] %v205
    $region21: #{bitlinear158.1} parent=1 // pred_fallthru
      _
    // Predicated region
    $region22: #{bitlinear158.1} parent=1 // pred_check
      _
    $region23: #{bitlinear158.1} parent=1 // pred_check_branch
      %211 = sbr.rel (0) target = $region25
    $region24: #{bitlinear158.1} parent=1 // pred_region
      %s213 = ssub.s32 512, 512
      %214 = vsyncadd [#allocation4], %s213
      %s215 = sshll.u32 [#allocation3], 4
      %s216 = int_to_ptr.vmem [resolvable:$true] %s215
      %221 = dma.vmem_to_hbm [thread:$0]  %s216, 512, %s3, [#allocation4], 256, 256, 16
    $region25: #{bitlinear158.1} parent=1 // pred_fallthru
      _
    // Predicated region
    $region26: #{bitlinear158.1} parent=1 // pred_check
      _
    $region27: #{bitlinear158.1} parent=1 // pred_check_branch
      %223 = sbr.rel (0) target = $region29
    $region28: #{bitlinear158.1} parent=1 // pred_region
      %224 = dma.done [#allocation4], 512
    $region29: #{bitlinear158.1} parent=1 // pred_fallthru
      _
    %225 = vsyncpa [#allocation4], 1

</llo_original>
